<compile_context>
chip_gen: v7x
topology: tpu7x:2x2x1
jax: 0.10.0
libtpu: 0.0.40
codegen_flags: <defaults>
</compile_context>

<pallas_src>
import jax
import jax.numpy as jnp
from jax import lax
from jax.experimental import pallas as pl
from jax.experimental.pallas import tpu as pltpu


def _round_up(x, m):
    return ((x + m - 1) // m) * m


# -----------------------------------------------------------------------------
# Tiled matmul + bias: (M, K)bf16 @ (K, OCp)bf16 + bias -> (M, OCp)
# grid = (M tiles, OCp tiles, K tiles); K last ("arbitrary"); f32 accumulator.
# -----------------------------------------------------------------------------
def _matmul_bias_kernel(a_ref, b_ref, bias_ref, o_ref, acc_ref):
    @pl.when(pl.program_id(2) == 0)
    def _():
        acc_ref[...] = jnp.zeros_like(acc_ref)

    acc_ref[...] += jnp.dot(a_ref[...], b_ref[...],
                            preferred_element_type=jnp.float32)

    @pl.when(pl.program_id(2) == pl.num_programs(2) - 1)
    def _():
        o_ref[...] = (acc_ref[...] + bias_ref[...]).astype(o_ref.dtype)


def _pallas_matmul_bias(a, b, bias2d, out_dtype, tm_max=512, tk_max=2048):
    """a: (M, K) bf16, b: (K, OCp) bf16, bias2d: (1, OCp) f32 -> (M, OCp)."""
    m, k = a.shape
    k2, ocp = b.shape
    assert k == k2 and ocp % 128 == 0
    # Ragged last M block is fine: Pallas masks the write-back of out-of-range
    # rows, so no host-side pad of A nor slice of the output is needed.
    tm = m if m <= tm_max else tm_max
    tn = 256 if ocp % 256 == 0 else 128
    if k <= tk_max:
        tk = k
    else:
        # K tiles must divide K exactly (a ragged K block would fold stale VMEM
        # into the accumulator).  conv K = kh*kw*C always has a divisor here.
        tk = max(d for d in range(tk_max, 0, -1) if k % d == 0)
    grid = (pl.cdiv(m, tm), ocp // tn, k // tk)
    return pl.pallas_call(
        _matmul_bias_kernel,
        out_shape=jax.ShapeDtypeStruct((m, ocp), out_dtype),
        grid=grid,
        in_specs=[
            pl.BlockSpec((tm, tk), lambda i, j, kk: (i, kk)),
            pl.BlockSpec((tk, tn), lambda i, j, kk: (kk, j)),
            pl.BlockSpec((1, tn), lambda i, j, kk: (0, j)),
        ],
        out_specs=pl.BlockSpec((tm, tn), lambda i, j, kk: (i, j)),
        scratch_shapes=[pltpu.VMEM((tm, tn), jnp.float32)],
        compiler_params=pltpu.CompilerParams(
            dimension_semantics=("parallel", "parallel", "arbitrary"),
            vmem_limit_bytes=64 * 1024 * 1024,
        ),
    )(a, b, bias2d)


def _conv_downsample_forward(x, b_mat, bias_pad, oc, kh, kw, padding):
    """NCHW stride-2 conv via NHWC bf16 im2col + Pallas matmul (+bias)."""
    n, c, h, w = x.shape
    stride = 2
    if padding == 0:
        # matches the module's F.pad(x, (0, 1, 0, 1)) followed by a VALID conv
        pads = ((0, 0), (0, 0), (0, 1), (0, 1))
    else:
        # diffusers semantics: nn.Conv2d(..., padding=padding) (symmetric)
        pads = ((0, 0), (0, 0), (padding, padding), (padding, padding))
    # TODO(synk): if the surrounding model is channels-last, hoist the
    # NCHW<->NHWC relayouts (and ideally the im2col gather itself) out of this
    # module; here they are done once per call at the boundary.
    xh = jnp.transpose(jnp.pad(x, pads), (0, 2, 3, 1)).astype(jnp.bfloat16)
    hp, wp = xh.shape[1], xh.shape[2]
    oh = (hp - kh) // stride + 1
    ow = (wp - kw) // stride + 1
    # NHWC im2col: contiguous lane-dim (C) slices, taps major / channels minor,
    # no 5-D transpose.  K = kh*kw*C stays the lane dim of A, so only OC (the
    # output lane dim) is padded to a multiple of 128; padding K would inflate
    # the large activation matrix for no store-side benefit.
    cols = [xh[:, i:i + stride * (oh - 1) + 1:stride,
                  j:j + stride * (ow - 1) + 1:stride, :]
            for i in range(kh) for j in range(kw)]
    a = jnp.stack(cols, axis=3).reshape(n * oh * ow, kh * kw * c)
    out = _pallas_matmul_bias(a, b_mat, bias_pad, out_dtype=x.dtype)
    out = out[:, :oc].reshape(n, oh, ow, oc)
    return jnp.transpose(out, (0, 3, 1, 2))


# -----------------------------------------------------------------------------
# AvgPool2d(2, 2): bandwidth-bound pooling kernel (no CxC identity conv).
# Each input row of the kernel holds one 2-row group: [row 2*oh | row 2*oh+1].
# -----------------------------------------------------------------------------
def _avgpool_kernel(x_ref, p_ref, o_ref):
    v = x_ref[...]                                   # (tr, 2*W2)
    w2 = v.shape[1] // 2
    s = v[:, :w2] + v[:, w2:]                        # VPU vertical pair-sum
    # horizontal 2:1 pairing (and the 1/4 factor) via a tiny (W2, OW) matrix;
    # avoids lane-strided slicing entirely.
    o_ref[...] = jnp.dot(s.astype(jnp.bfloat16), p_ref[...],
                         preferred_element_type=jnp.float32).astype(o_ref.dtype)


def _avgpool2x2_pallas(x, tr_max=1024):
    """AvgPool2d(kernel_size=2, stride=2), floor mode, NCHW in/out."""
    n, c, h, w = x.shape
    oh, ow = h // 2, w // 2
    w2 = 2 * ow
    r = n * c * oh
    # free row-major reshape (crop only if H/W odd): row (n,c,oh) = 2 input rows
    xr = x[:, :, :2 * oh, :w2].reshape(r, 2 * w2)
    p = (jnp.repeat(jnp.eye(ow, dtype=jnp.float32), 2, axis=0) * 0.25
         ).astype(jnp.bfloat16)                      # (W2, OW)
    tr = r if r <= tr_max else tr_max
    out = pl.pallas_call(
        _avgpool_kernel,
        out_shape=jax.ShapeDtypeStruct((r, ow), x.dtype),
        grid=(pl.cdiv(r, tr),),
        in_specs=[pl.BlockSpec((tr, 2 * w2), lambda i: (i, 0)),
                  pl.BlockSpec((w2, ow), lambda i: (0, 0))],
        out_specs=pl.BlockSpec((tr, ow), lambda i: (i, 0)),
        compiler_params=pltpu.CompilerParams(
            dimension_semantics=("parallel",)),
    )(xr, p)
    return out.reshape(n, c, oh, ow)


class Downsample2D:
    """JAX/Pallas port of the diffusers Downsample2D forward pass (NCHW I/O)."""

    def __init__(self, channels, use_conv=False, out_channels=None, padding=1,
                 name="conv", kernel_size=3, norm_type=None, eps=None,
                 elementwise_affine=None, bias=True, *, key=None):
        self.channels = channels
        self.out_channels = out_channels or channels
        self.use_conv = use_conv
        self.padding = padding
        self.kernel_size = kernel_size
        self.stride = 2
        self.name = name
        if norm_type is not None:
            # TODO(synk): ln_norm / rms_norm pre-norm variants not implemented
            # (module default is norm_type=None).
            raise ValueError(f"unsupported norm_type: {norm_type}")
        self.norm = None

        if use_conv:
            # nn.Conv2d(channels, out_channels, kernel_size, stride=2,
            #           padding=self.padding, bias=bias)  -- diffusers semantics
            key = jax.random.PRNGKey(0) if key is None else key
            kwt, kbs = jax.random.split(key)
            fan_in = self.channels * kernel_size * kernel_size
            bound = 1.0 / (fan_in ** 0.5)
            self.weight = jax.random.uniform(
                kwt,
                (self.out_channels, self.channels, kernel_size, kernel_size),
                jnp.float32, -bound, bound)
            if bias:
                self.bias = jax.random.uniform(
                    kbs, (self.out_channels,), jnp.float32, -bound, bound)
            else:
                self.bias = jnp.zeros((self.out_channels,), jnp.float32)
            # Pre-packed matmul operands: (kh, kw, C, OC) -> (K, OCp) bf16 with
            # OC zero-padded to a multiple of 128 (lane-dense, unmasked stores).
            ocp = _round_up(self.out_channels, 128)
            bmat = jnp.transpose(self.weight, (2, 3, 1, 0)).reshape(
                kernel_size * kernel_size * self.channels, self.out_channels)
            self._b_mat = jnp.pad(
                bmat, ((0, 0), (0, ocp - self.out_channels))
            ).astype(jnp.bfloat16)
            self._bias_pad = jnp.pad(
                self.bias, (0, ocp - self.out_channels)
            ).reshape(1, ocp).astype(jnp.float32)
        else:
            assert self.channels == self.out_channels
            self.weight = None
            self.bias = None

    def __call__(self, hidden_states):
        assert hidden_states.shape[1] == self.channels
        if self.use_conv:
            return _conv_downsample_forward(
                hidden_states, self._b_mat, self._bias_pad, self.out_channels,
                self.kernel_size, self.kernel_size, self.padding)
        return _avgpool2x2_pallas(hidden_states)


if __name__ == "__main__":
    key = jax.random.PRNGKey(0)
    kx, kp1, kp0 = jax.random.split(key, 3)
    x = jax.random.normal(kx, (2, 4, 16, 16), jnp.float32)   # NCHW

    # ---- use_conv=True, padding=1 (diffusers default: symmetric pad, 3x3 s2) ----
    down1 = Downsample2D(channels=4, use_conv=True, out_channels=4,
                         padding=1, kernel_size=3, bias=True, key=kp1)
    y1 = jax.block_until_ready(jax.jit(down1.__call__)(x))
    assert y1.shape == (2, 4, 8, 8), y1.shape
    ref1 = lax.conv_general_dilated(
        x, down1.weight, window_strides=(2, 2), padding=((1, 1), (1, 1)),
        dimension_numbers=("NCHW", "OIHW", "NCHW"),
        precision=lax.Precision.HIGHEST,
    ) + down1.bias.reshape(1, -1, 1, 1)
    err1 = float(jnp.max(jnp.abs(y1 - ref1)))
    assert jnp.allclose(y1, ref1, atol=3e-2, rtol=3e-2), err1

    # ---- use_conv=True, padding=0 (asymmetric F.pad then VALID conv) ----
    down0 = Downsample2D(channels=4, use_conv=True, out_channels=4,
                         padding=0, kernel_size=3, bias=True, key=kp0)
    y0 = jax.block_until_ready(jax.jit(down0.__call__)(x))
    assert y0.shape == (2, 4, 8, 8), y0.shape
    x_asym = jnp.pad(x, ((0, 0), (0, 0), (0, 1), (0, 1)))
    ref0 = lax.conv_general_dilated(
        x_asym, down0.weight, window_strides=(2, 2), padding="VALID",
        dimension_numbers=("NCHW", "OIHW", "NCHW"),
        precision=lax.Precision.HIGHEST,
    ) + down0.bias.reshape(1, -1, 1, 1)
    err0 = float(jnp.max(jnp.abs(y0 - ref0)))
    assert jnp.allclose(y0, ref0, atol=3e-2, rtol=3e-2), err0

    # ---- use_conv=False (AvgPool2d(2, 2)) ----
    downp = Downsample2D(channels=4, use_conv=False)
    yp = jax.block_until_ready(jax.jit(downp.__call__)(x))
    assert yp.shape == (2, 4, 8, 8), yp.shape
    refp = x.reshape(2, 4, 8, 2, 8, 2).mean(axis=(3, 5))
    errp = float(jnp.max(jnp.abs(yp - refp)))
    assert jnp.allclose(yp, refp, atol=2e-2, rtol=2e-2), errp

    print("KERNEL_OK")
</pallas_src>

<mosaic_0001>
module attributes {stable_mosaic.version = 11 : i64} {
  func.func @_matmul_bias_kernel(%arg0: i32, %arg1: i32, %arg2: i32, %arg3: memref<128x36xbf16, #tpu.memory_space<vmem>>, %arg4: memref<36x128xbf16, #tpu.memory_space<vmem>>, %arg5: memref<1x128xf32, #tpu.memory_space<vmem>>, %arg6: memref<128x128xf32, #tpu.memory_space<vmem>>, %arg7: memref<128x128xf32, #tpu.memory_space<vmem>>) attributes {dimension_semantics = [#tpu.dimension_semantics<parallel>, #tpu.dimension_semantics<parallel>, #tpu.dimension_semantics<arbitrary>], iteration_bounds = array<i64: 1, 1, 1>, scalar_prefetch = 0 : i64, scratch_operands = 1 : i64, tpu.core_type = #tpu.core_type<tc>, window_params = [{transform_indices = @transform_0, window_bounds = array<i64: 128, 36>}, {transform_indices = @transform_1, window_bounds = array<i64: 36, 128>}, {transform_indices = @transform_2, window_bounds = array<i64: 1, 128>}, {transform_indices = @transform_3, window_bounds = array<i64: 128, 128>}]} {
    %c0_i32 = arith.constant 0 : i32
    %0 = arith.cmpi eq, %arg2, %c0_i32 : i32
    %1 = arith.extui %0 : i1 to i32
    %c0_i32_0 = arith.constant 0 : i32
    %2 = arith.cmpi ne, %1, %c0_i32_0 : i32
    scf.if %2 {
      %cst_10 = arith.constant 0.000000e+00 : f32
      %12 = vector.broadcast %cst_10 : f32 to vector<128x128xf32>
      %c0_11 = arith.constant 0 : index
      %c0_12 = arith.constant 0 : index
      %13 = vector.load %arg7[%c0_11, %c0_12] : memref<128x128xf32, #tpu.memory_space<vmem>>, vector<128x128xf32>
      tpu.vector_store %arg7[%c0_11, %c0_12], %12 {strides = array<i32>} : memref<128x128xf32, #tpu.memory_space<vmem>>, vector<128x128xf32>,
    } else {
    }
    %c0 = arith.constant 0 : index
    %c0_1 = arith.constant 0 : index
    %3 = vector.load %arg7[%c0, %c0_1] : memref<128x128xf32, #tpu.memory_space<vmem>>, vector<128x128xf32>
    %c0_2 = arith.constant 0 : index
    %c0_3 = arith.constant 0 : index
    %4 = vector.load %arg3[%c0_2, %c0_3] : memref<128x36xbf16, #tpu.memory_space<vmem>>, vector<128x36xbf16>
    %c0_4 = arith.constant 0 : index
    %c0_5 = arith.constant 0 : index
    %5 = vector.load %arg4[%c0_4, %c0_5] : memref<36x128xbf16, #tpu.memory_space<vmem>>, vector<36x128xbf16>
    %cst = arith.constant dense<0.000000e+00> : vector<128x128xf32>
    %6 = tpu.matmul %4, %5, %cst {dimension_numbers = #tpu.dot_dimension_numbers<[1], [0], [0], [1], [0, 0, 1, 1], [], []>} : vector<128x36xbf16>, vector<36x128xbf16>, vector<128x128xf32> -> vector<128x128xf32>
    %7 = arith.addf %3, %6 : vector<128x128xf32>
    %c0_6 = arith.constant 0 : index
    %c0_7 = arith.constant 0 : index
    %8 = vector.load %arg7[%c0_6, %c0_7] : memref<128x128xf32, #tpu.memory_space<vmem>>, vector<128x128xf32>
    tpu.vector_store %arg7[%c0_6, %c0_7], %7 {strides = array<i32>} : memref<128x128xf32, #tpu.memory_space<vmem>>, vector<128x128xf32>,
    %c0_i32_8 = arith.constant 0 : i32
    %9 = arith.cmpi eq, %arg2, %c0_i32_8 : i32
    %10 = arith.extui %9 : i1 to i32
    %c0_i32_9 = arith.constant 0 : i32
    %11 = arith.cmpi ne, %10, %c0_i32_9 : i32
    scf.if %11 {
      %c0_10 = arith.constant 0 : index
      %c0_11 = arith.constant 0 : index
      %12 = vector.load %arg7[%c0_10, %c0_11] : memref<128x128xf32, #tpu.memory_space<vmem>>, vector<128x128xf32>
      %c0_12 = arith.constant 0 : index
      %c0_13 = arith.constant 0 : index
      %13 = vector.load %arg5[%c0_12, %c0_13] : memref<1x128xf32, #tpu.memory_space<vmem>>, vector<1x128xf32>
      %14 = vector.broadcast %13 : vector<1x128xf32> to vector<128x128xf32>
      %15 = arith.addf %12, %14 : vector<128x128xf32>
      %c0_14 = arith.constant 0 : index
      %c0_15 = arith.constant 0 : index
      %16 = vector.load %arg6[%c0_14, %c0_15] : memref<128x128xf32, #tpu.memory_space<vmem>>, vector<128x128xf32>
      tpu.vector_store %arg6[%c0_14, %c0_15], %15 {strides = array<i32>} : memref<128x128xf32, #tpu.memory_space<vmem>>, vector<128x128xf32>,
    } else {
    }
    return
  }
  func.func @transform_0(%arg0: i32, %arg1: i32, %arg2: i32) -> (i32, i32) {
    %c0_i32 = arith.constant 0 : i32
    return %arg0, %arg2 : i32, i32
  }
  func.func @transform_1(%arg0: i32, %arg1: i32, %arg2: i32) -> (i32, i32) {
    %c0_i32 = arith.constant 0 : i32
    return %arg2, %arg1 : i32, i32
  }
  func.func @transform_2(%arg0: i32, %arg1: i32, %arg2: i32) -> (i32, i32) {
    %c0_i32 = arith.constant 0 : i32
    %c0_i32_0 = arith.constant 0 : i32
    return %c0_i32, %arg1 : i32, i32
  }
  func.func @transform_3(%arg0: i32, %arg1: i32, %arg2: i32) -> (i32, i32) {
    %c0_i32 = arith.constant 0 : i32
    return %arg0, %arg1 : i32, i32
  }
}

</mosaic_0001>

<llo_original>
// kernel: a_call__.1
$region0: #{a_call__.1}
  #allocation0 [shape = 'u32[]', space=smem, size = 0x4, offset = 0x4, fixed_abs, tag = 'smem constant byte address 0x4 - core index']
  #allocation1 [shape = 'u32[144,128]{1,0:T(1,128)}', space=vmem, size = 0x12000, scoped, tag = 'internal scratch']
  #allocation2 [shape = 'f32[128,128]{1,0:T(8,128)}', space=vmem, size = 0x10000, scoped, tag = 'scratch operand']
  %s0 = inlined_call_operand.hbm [shape: bf16[128,36], index: 0, kind: input, shape index: {}]
  %s1 = inlined_call_operand.hbm [shape: bf16[36,128], index: 1, kind: input, shape index: {}]
  %s2 = inlined_call_operand.hbm [shape: f32[1,128], index: 2, kind: input, shape index: {}]
  %s3 = inlined_call_operand.hbm [shape: f32[128,128], index: 3, kind: output, shape index: {}]
  %s4 = sld [smem:[#allocation0]]
  $region42: #{a_call__.1} parent=0
    _
  %s6 = ssub.s32 1, %s4
  %s7 = scalar_select 0, %s6, %s4
  $region1: #{a_call__.1} parent=0
    #allocation3 [shape = 'u8[32768]{0}', space=vmem, size = 0x8000, scoped, tag = 'input window, operand 0, single buffered']
    #allocation4 [shape = 's32[1]{0}', space=sflag, size = 0x4, scoped, tag = 'scoped memory for a_call__.1']
    #allocation5 [shape = 's32[1]{0}', space=sflag, size = 0x4, scoped, tag = 'scoped memory for a_call__.1']
    #allocation6 [shape = 'u8[10240]{0}', space=vmem, size = 0x2800, scoped, tag = 'input window, operand 1, single buffered']
    #allocation7 [shape = 's32[1]{0}', space=sflag, size = 0x4, scoped, tag = 'scoped memory for a_call__.1']
    #allocation8 [shape = 'u8[512]{0}', space=vmem, size = 0x400, scoped, tag = 'input window, operand 2, single buffered']
    #allocation9 [shape = 'u8[65536]{0}', space=vmem, size = 0x10000, scoped, tag = 'output window, operand 0, single buffered']
    %8 = vsyncpa [#allocation4], 0
    %9 = vsyncpa [#allocation7], 0
    %10 = vsyncpa [#allocation5], 0
    // Predicated region
    $region2: #{a_call__.1} parent=1 // pred_check
      _
    $region3: #{a_call__.1} parent=1 // pred_check_branch
      %12 = sbr.rel (0) target = $region5
    $region4: #{a_call__.1} parent=1 // pred_region
      %s14 = ssub.s32 1024, 1024
      %15 = vsyncadd [#allocation4], %s14
      %s16 = sshll.u32 [#allocation3], 4
      %s17 = int_to_ptr.vmem [resolvable:$true] %s16
      %22 = dma.hbm_to_vmem [thread:$0]  %s0, 1024, %s17, [#allocation4], 64, 64, 4
    $region5: #{a_call__.1} parent=1 // pred_fallthru
      _
    // Predicated region
    $region6: #{a_call__.1} parent=1 // pred_check
      _
    $region7: #{a_call__.1} parent=1 // pred_check_branch
      %24 = sbr.rel (0) target = $region9
    $region8: #{a_call__.1} parent=1 // pred_region
      %s26 = ssub.s32 320, 320
      %27 = vsyncadd [#allocation7], %s26
      %s28 = sshll.u32 [#allocation6], 4
      %s29 = int_to_ptr.vmem [resolvable:$true] %s28
      %34 = dma.hbm_to_vmem [thread:$0]  %s1, 320, %s29, [#allocation7], 64, 64, 4
    $region9: #{a_call__.1} parent=1 // pred_fallthru
      _
    // Predicated region
    $region10: #{a_call__.1} parent=1 // pred_check
      _
    $region11: #{a_call__.1} parent=1 // pred_check_branch
      %36 = sbr.rel (0) target = $region13
    $region12: #{a_call__.1} parent=1 // pred_region
      %s38 = ssub.s32 16, 16
      %39 = vsyncadd [#allocation7], %s38
      %s41 = sshll.u32 [#allocation8], 4
      %s42 = int_to_ptr.vmem [resolvable:$true] %s41
      %44 = dma.hbm_to_vmem [thread:$0]  %s2, 16, %s42, [#allocation7]
    $region13: #{a_call__.1} parent=1 // pred_fallthru
      _
    // Predicated region
    $region14: #{a_call__.1} parent=1 // pred_check
      _
    $region15: #{a_call__.1} parent=1 // pred_check_branch
      %46 = sbr.rel (0) target = $region17
    $region16: #{a_call__.1} parent=1 // pred_region
      %47 = dma.done [#allocation4], 1024
    $region17: #{a_call__.1} parent=1 // pred_fallthru
      _
    // Predicated region
    $region18: #{a_call__.1} parent=1 // pred_check
      _
    $region19: #{a_call__.1} parent=1 // pred_check_branch
      %49 = sbr.rel (0) target = $region21
    $region20: #{a_call__.1} parent=1 // pred_region
      %50 = dma.done [#allocation7], 320
    $region21: #{a_call__.1} parent=1 // pred_fallthru
      _
    // Predicated region
    $region22: #{a_call__.1} parent=1 // pred_check
      _
    $region23: #{a_call__.1} parent=1 // pred_check_branch
      %52 = sbr.rel (0) target = $region25
    $region24: #{a_call__.1} parent=1 // pred_region
      %53 = dma.done [#allocation7], 16
    $region25: #{a_call__.1} parent=1 // pred_fallthru
      _
    %p55 = scmp.eq.s32.totalorder 0, 0
    // Predicated region
    $region26: #{a_call__.1} parent=1 // pred_check
      %p56 = pneg %p55
    $region27: #{a_call__.1} parent=1 // pred_check_branch
      %58 = sbr.rel (%p56) target = $region29
    $region28: #{a_call__.1} parent=1 // pred_region
      %59 = vst [vmem:[#allocation2] sm:$0xff] 0.0
      %60 = vst [vmem:[#allocation2 + $0x8] sm:$0xff] 0.0
      %61 = vst [vmem:[#allocation2 + $0x10] sm:$0xff] 0.0
      %62 = vst [vmem:[#allocation2 + $0x18] sm:$0xff] 0.0
      %63 = vst [vmem:[#allocation2 + $0x20] sm:$0xff] 0.0
      %64 = vst [vmem:[#allocation2 + $0x28] sm:$0xff] 0.0
      %65 = vst [vmem:[#allocation2 + $0x30] sm:$0xff] 0.0
      %66 = vst [vmem:[#allocation2 + $0x38] sm:$0xff] 0.0
      %67 = vst [vmem:[#allocation2 + $0x40] sm:$0xff] 0.0
      %68 = vst [vmem:[#allocation2 + $0x48] sm:$0xff] 0.0
      %69 = vst [vmem:[#allocation2 + $0x50] sm:$0xff] 0.0
      %70 = vst [vmem:[#allocation2 + $0x58] sm:$0xff] 0.0
      %71 = vst [vmem:[#allocation2 + $0x60] sm:$0xff] 0.0
      %72 = vst [vmem:[#allocation2 + $0x68] sm:$0xff] 0.0
      %73 = vst [vmem:[#allocation2 + $0x70] sm:$0xff] 0.0
      %74 = vst [vmem:[#allocation2 + $0x78] sm:$0xff] 0.0
    $region29: #{a_call__.1} parent=1 // pred_fallthru
      _
    %v75 = vld [vmem:[#allocation2] sm:$0xff]
    %v76 = vld [vmem:[#allocation2 + $0x8] sm:$0xff]
    %v77 = vld [vmem:[#allocation2 + $0x10] sm:$0xff]
    %v78 = vld [vmem:[#allocation2 + $0x18] sm:$0xff]
    %v79 = vld [vmem:[#allocation2 + $0x20] sm:$0xff]
    %v80 = vld [vmem:[#allocation2 + $0x28] sm:$0xff]
    %v81 = vld [vmem:[#allocation2 + $0x30] sm:$0xff]
    %v82 = vld [vmem:[#allocation2 + $0x38] sm:$0xff]
    %v83 = vld [vmem:[#allocation2 + $0x40] sm:$0xff]
    %v84 = vld [vmem:[#allocation2 + $0x48] sm:$0xff]
    %v85 = vld [vmem:[#allocation2 + $0x50] sm:$0xff]
    %v86 = vld [vmem:[#allocation2 + $0x58] sm:$0xff]
    %v87 = vld [vmem:[#allocation2 + $0x60] sm:$0xff]
    %v88 = vld [vmem:[#allocation2 + $0x68] sm:$0xff]
    %v89 = vld [vmem:[#allocation2 + $0x70] sm:$0xff]
    %v90 = vld [vmem:[#allocation2 + $0x78] sm:$0xff]
    %v91 = vld [vmem:[#allocation3] sm:$0xf]
    %v92 = vld [vmem:[#allocation3 + $0x4] sm:$0xf]
    %v93 = vld [vmem:[#allocation3 + $0x8] sm:$0xf]
    %v94 = vld [vmem:[#allocation3 + $0xc] sm:$0xf]
    %v95 = vld [vmem:[#allocation3 + $0x10] sm:$0xf]
    %v96 = vld [vmem:[#allocation3 + $0x14] sm:$0xf]
    %v97 = vld [vmem:[#allocation3 + $0x18] sm:$0xf]
    %v98 = vld [vmem:[#allocation3 + $0x1c] sm:$0xf]
    %v99 = vld [vmem:[#allocation3 + $0x20] sm:$0xf]
    %v100 = vld [vmem:[#allocation3 + $0x24] sm:$0xf]
    %v101 = vld [vmem:[#allocation3 + $0x28] sm:$0xf]
    %v102 = vld [vmem:[#allocation3 + $0x2c] sm:$0xf]
    %v103 = vld [vmem:[#allocation3 + $0x30] sm:$0xf]
    %v104 = vld [vmem:[#allocation3 + $0x34] sm:$0xf]
    %v105 = vld [vmem:[#allocation3 + $0x38] sm:$0xf]
    %v106 = vld [vmem:[#allocation3 + $0x3c] sm:$0xf]
    %v107 = vld [vmem:[#allocation6] sm:$0xf]
    %v108 = vld [vmem:[#allocation6 + $0x4] sm:$0xf]
    %v109 = vld [vmem:[#allocation6 + $0x8] sm:$0xf]
    %v110 = vld [vmem:[#allocation6 + $0xc] sm:$0xf]
    %v111 = vld [vmem:[#allocation6 + $0x10] sm:$0x3]
    %v128 = vunpack.c.l.b16 %v91
    %v129 = vunpack.c.l.b16 %v92
    %v130 = vunpack.c.l.b16 %v93
    %v131 = vunpack.c.l.b16 %v94
    %v132 = vunpack.c.l.b16 %v95
    %v133 = vunpack.c.l.b16 %v96
    %v134 = vunpack.c.l.b16 %v97
    %v135 = vunpack.c.l.b16 %v98
    %v136 = vunpack.c.l.b16 %v99
    %v137 = vunpack.c.l.b16 %v100
    %v138 = vunpack.c.l.b16 %v101
    %v139 = vunpack.c.l.b16 %v102
    %v140 = vunpack.c.l.b16 %v103
    %v141 = vunpack.c.l.b16 %v104
    %v142 = vunpack.c.l.b16 %v105
    %v143 = vunpack.c.l.b16 %v106
    %v144 = vpack.c.b16 %v129, %v128
    %v145 = vpack.c.b16 %v131, %v130
    %v146 = vpack.c.b16 %v133, %v132
    %v147 = vpack.c.b16 %v135, %v134
    %v148 = vpack.c.b16 %v137, %v136
    %v149 = vpack.c.b16 %v139, %v138
    %v150 = vpack.c.b16 %v141, %v140
    %v151 = vpack.c.b16 %v143, %v142
    %v157 = vunpack.c.l.b16 %v107
    %v158 = vunpack.c.l.b16 %v108
    %v159 = vunpack.c.l.b16 %v109
    %v160 = vunpack.c.l.b16 %v110
    %v161 = vunpack.c.l.b16 %v111
    %v162 = vpack.c.b16 %v158, %v157
    %v163 = vpack.c.b16 %v160, %v159
    %v164 = vpack.c.b16 %v161, %v161
    %vm167 = vcmask 293888
    %v169 = vsel %vm167, %v144, 0
    %v172 = vsel %vm167, %v145, 0
    %v175 = vsel %vm167, %v146, 0
    %v178 = vsel %vm167, %v147, 0
    %v181 = vsel %vm167, %v148, 0
    %v184 = vsel %vm167, %v149, 0
    %v187 = vsel %vm167, %v150, 0
    %v190 = vsel %vm167, %v151, 0
    %vm192 = vcmask 1041408
    %v194 = vsel %vm192, %v164, 0
    %196 = vmatprep.subr.bf16.mxu0 0
    %197 = vmatpush1.bf16.msra.mxu0 %v162
    %198 = vmatprep.subr.bf16.mxu0 0
    %199 = vmatpush1.bf16.msra.mxu0 %v163
    %200 = vmatprep.subr.bf16.mxu0 0
    %201 = vmatpush1.bf16.msra.mxu0 %v194
    %202 = vmatprep.subr.bf16.mxu0 0
    %203 = vmatpush1.bf16.msra.mxu0 0
    %204 = vmatprep.subr.bf16.mxu0 0
    %205 = vmatpush1.bf16.msra.mxu0 0
    %206 = vmatprep.subr.bf16.mxu0 0
    %207 = vmatpush1.bf16.msra.mxu0 0
    %208 = vmatprep.subr.bf16.mxu0 0
    %209 = vmatpush1.bf16.msra.mxu0 0
    %210 = vmatprep.subr.bf16.mxu0 0
    %211 = vmatpush1.bf16.msra.mxu0 0
    %212 = vmatprep.subr.bf16.mxu0 0
    %213 = vmatpush1.bf16.msra.mxu0 0
    %214 = vmatprep.subr.bf16.mxu0 0
    %215 = vmatpush1.bf16.msra.mxu0 0
    %216 = vmatprep.subr.bf16.mxu0 0
    %217 = vmatpush1.bf16.msra.mxu0 0
    %218 = vmatprep.subr.bf16.mxu0 0
    %219 = vmatpush1.bf16.msra.mxu0 0
    %220 = vmatprep.subr.bf16.mxu0 0
    %221 = vmatpush1.bf16.msra.mxu0 0
    %222 = vmatprep.subr.bf16.mxu0 0
    %223 = vmatpush1.bf16.msra.mxu0 0
    %224 = vmatprep.subr.bf16.mxu0 0
    %225 = vmatpush1.bf16.msra.mxu0 0
    %226 = vmatprep.subr.bf16.mxu0 0
    %227 = vmatpush1.bf16.msra.mxu0 0
    %228 = vmatprep.mubr.bf16.mxu0 0
    %229 = vmatmul.mubr.bf16.gmra.mrb[0].mxu0 %v169
    %v230 = vpop.f32.mrb[0].mxu0
    %v231 = vadd.f32 0.0, %v230
    %v232 = vpop.f32.mrb[0].mxu0
    %v233 = vpop.f32.mrb[0].mxu0
    %v234 = vadd.f32 0.0, %v233
    %v235 = vpop.f32.mrb[0].mxu0
    %236 = vmatprep.mubr.bf16.mxu0 0
    %237 = vmatmul.mubr.bf16.gmra.mrb[0].mxu0 %v172
    %v238 = vpop.f32.mrb[0].mxu0
    %v239 = vadd.f32 0.0, %v238
    %v240 = vpop.f32.mrb[0].mxu0
    %v241 = vpop.f32.mrb[0].mxu0
    %v242 = vadd.f32 0.0, %v241
    %v243 = vpop.f32.mrb[0].mxu0
    %244 = vmatprep.mubr.bf16.mxu0 0
    %245 = vmatmul.mubr.bf16.gmra.mrb[0].mxu0 %v175
    %v246 = vpop.f32.mrb[0].mxu0
    %v247 = vadd.f32 0.0, %v246
    %v248 = vpop.f32.mrb[0].mxu0
    %v249 = vpop.f32.mrb[0].mxu0
    %v250 = vadd.f32 0.0, %v249
    %v251 = vpop.f32.mrb[0].mxu0
    %252 = vmatprep.mubr.bf16.mxu0 0
    %253 = vmatmul.mubr.bf16.gmra.mrb[0].mxu0 %v178
    %v254 = vpop.f32.mrb[0].mxu0
    %v255 = vadd.f32 0.0, %v254
    %v256 = vpop.f32.mrb[0].mxu0
    %v257 = vpop.f32.mrb[0].mxu0
    %v258 = vadd.f32 0.0, %v257
    %v259 = vpop.f32.mrb[0].mxu0
    %260 = vmatprep.mubr.bf16.mxu0 0
    %261 = vmatmul.mubr.bf16.gmra.mrb[0].mxu0 %v181
    %v262 = vpop.f32.mrb[0].mxu0
    %v263 = vadd.f32 0.0, %v262
    %v264 = vpop.f32.mrb[0].mxu0
    %v265 = vpop.f32.mrb[0].mxu0
    %v266 = vadd.f32 0.0, %v265
    %v267 = vpop.f32.mrb[0].mxu0
    %268 = vmatprep.mubr.bf16.mxu0 0
    %269 = vmatmul.mubr.bf16.gmra.mrb[0].mxu0 %v184
    %v270 = vpop.f32.mrb[0].mxu0
    %v271 = vadd.f32 0.0, %v270
    %v272 = vpop.f32.mrb[0].mxu0
    %v273 = vpop.f32.mrb[0].mxu0
    %v274 = vadd.f32 0.0, %v273
    %v275 = vpop.f32.mrb[0].mxu0
    %276 = vmatprep.mubr.bf16.mxu0 0
    %277 = vmatmul.mubr.bf16.gmra.mrb[0].mxu0 %v187
    %v278 = vpop.f32.mrb[0].mxu0
    %v279 = vadd.f32 0.0, %v278
    %v280 = vpop.f32.mrb[0].mxu0
    %v281 = vpop.f32.mrb[0].mxu0
    %v282 = vadd.f32 0.0, %v281
    %v283 = vpop.f32.mrb[0].mxu0
    %284 = vmatprep.mubr.bf16.mxu0 0
    %285 = vmatmul.mubr.bf16.gmra.mrb[0].mxu0 %v190
    %v286 = vpop.f32.mrb[0].mxu0
    %v287 = vadd.f32 0.0, %v286
    %v288 = vpop.f32.mrb[0].mxu0
    %v289 = vpop.f32.mrb[0].mxu0
    %v290 = vadd.f32 0.0, %v289
    %v291 = vpop.f32.mrb[0].mxu0
    %292 = vdwg.mxu0
    %v293 = vadd.f32 %v75, %v231
    %v294 = vadd.f32 %v76, %v234
    %v295 = vadd.f32 %v77, %v239
    %v296 = vadd.f32 %v78, %v242
    %v297 = vadd.f32 %v79, %v247
    %v298 = vadd.f32 %v80, %v250
    %v299 = vadd.f32 %v81, %v255
    %v300 = vadd.f32 %v82, %v258
    %v301 = vadd.f32 %v83, %v263
    %v302 = vadd.f32 %v84, %v266
    %v303 = vadd.f32 %v85, %v271
    %v304 = vadd.f32 %v86, %v274
    %v305 = vadd.f32 %v87, %v279
    %v306 = vadd.f32 %v88, %v282
    %v307 = vadd.f32 %v89, %v287
    %v308 = vadd.f32 %v90, %v290
    %309 = vst [vmem:[#allocation2] sm:$0xff] %v293
    %310 = vst [vmem:[#allocation2 + $0x8] sm:$0xff] %v294
    %311 = vst [vmem:[#allocation2 + $0x10] sm:$0xff] %v295
    %312 = vst [vmem:[#allocation2 + $0x18] sm:$0xff] %v296
    %313 = vst [vmem:[#allocation2 + $0x20] sm:$0xff] %v297
    %314 = vst [vmem:[#allocation2 + $0x28] sm:$0xff] %v298
    %315 = vst [vmem:[#allocation2 + $0x30] sm:$0xff] %v299
    %316 = vst [vmem:[#allocation2 + $0x38] sm:$0xff] %v300
    %317 = vst [vmem:[#allocation2 + $0x40] sm:$0xff] %v301
    %318 = vst [vmem:[#allocation2 + $0x48] sm:$0xff] %v302
    %319 = vst [vmem:[#allocation2 + $0x50] sm:$0xff] %v303
    %320 = vst [vmem:[#allocation2 + $0x58] sm:$0xff] %v304
    %321 = vst [vmem:[#allocation2 + $0x60] sm:$0xff] %v305
    %322 = vst [vmem:[#allocation2 + $0x68] sm:$0xff] %v306
    %323 = vst [vmem:[#allocation2 + $0x70] sm:$0xff] %v307
    %324 = vst [vmem:[#allocation2 + $0x78] sm:$0xff] %v308
    // Predicated region
    $region30: #{a_call__.1} parent=1 // pred_check
      %p325 = pneg %p55
    $region31: #{a_call__.1} parent=1 // pred_check_branch
      %327 = sbr.rel (%p325) target = $region33
    $region32: #{a_call__.1} parent=1 // pred_region
      %v328 = vld [vmem:[#allocation2] sm:$0xff]
      %v329 = vld [vmem:[#allocation2 + $0x8] sm:$0xff]
      %v330 = vld [vmem:[#allocation2 + $0x10] sm:$0xff]
      %v331 = vld [vmem:[#allocation2 + $0x18] sm:$0xff]
      %v332 = vld [vmem:[#allocation2 + $0x20] sm:$0xff]
      %v333 = vld [vmem:[#allocation2 + $0x28] sm:$0xff]
      %v334 = vld [vmem:[#allocation2 + $0x30] sm:$0xff]
      %v335 = vld [vmem:[#allocation2 + $0x38] sm:$0xff]
      %v336 = vld [vmem:[#allocation2 + $0x40] sm:$0xff]
      %v337 = vld [vmem:[#allocation2 + $0x48] sm:$0xff]
      %v338 = vld [vmem:[#allocation2 + $0x50] sm:$0xff]
      %v339 = vld [vmem:[#allocation2 + $0x58] sm:$0xff]
      %v340 = vld [vmem:[#allocation2 + $0x60] sm:$0xff]
      %v341 = vld [vmem:[#allocation2 + $0x68] sm:$0xff]
      %v342 = vld [vmem:[#allocation2 + $0x70] sm:$0xff]
      %v343 = vld [vmem:[#allocation2 + $0x78] sm:$0xff]
      %v344 = vld [vmem:[#allocation8] sm:$0x1]
      %v346 = vlaneseq
      %v347 = vshrl.u32 %v346, 7
      %v348 = vsub.s32 0, %v347
      %v349 = vrot.slane %v344, %v348
      %v351 = vadd.f32 %v328, %v349
      %v352 = vadd.f32 %v329, %v349
      %v353 = vadd.f32 %v330, %v349
      %v354 = vadd.f32 %v331, %v349
      %v355 = vadd.f32 %v332, %v349
      %v356 = vadd.f32 %v333, %v349
      %v357 = vadd.f32 %v334, %v349
      %v358 = vadd.f32 %v335, %v349
      %v359 = vadd.f32 %v336, %v349
      %v360 = vadd.f32 %v337, %v349
      %v361 = vadd.f32 %v338, %v349
      %v362 = vadd.f32 %v339, %v349
      %v363 = vadd.f32 %v340, %v349
      %v364 = vadd.f32 %v341, %v349
      %v365 = vadd.f32 %v342, %v349
      %v366 = vadd.f32 %v343, %v349
      %367 = vst [vmem:[#allocation9] sm:$0xff] %v351
      %368 = vst [vmem:[#allocation9 + $0x8] sm:$0xff] %v352
      %369 = vst [vmem:[#allocation9 + $0x10] sm:$0xff] %v353
      %370 = vst [vmem:[#allocation9 + $0x18] sm:$0xff] %v354
      %371 = vst [vmem:[#allocation9 + $0x20] sm:$0xff] %v355
      %372 = vst [vmem:[#allocation9 + $0x28] sm:$0xff] %v356
      %373 = vst [vmem:[#allocation9 + $0x30] sm:$0xff] %v357
      %374 = vst [vmem:[#allocation9 + $0x38] sm:$0xff] %v358
      %375 = vst [vmem:[#allocation9 + $0x40] sm:$0xff] %v359
      %376 = vst [vmem:[#allocation9 + $0x48] sm:$0xff] %v360
      %377 = vst [vmem:[#allocation9 + $0x50] sm:$0xff] %v361
      %378 = vst [vmem:[#allocation9 + $0x58] sm:$0xff] %v362
      %379 = vst [vmem:[#allocation9 + $0x60] sm:$0xff] %v363
      %380 = vst [vmem:[#allocation9 + $0x68] sm:$0xff] %v364
      %381 = vst [vmem:[#allocation9 + $0x70] sm:$0xff] %v365
      %382 = vst [vmem:[#allocation9 + $0x78] sm:$0xff] %v366
    $region33: #{a_call__.1} parent=1 // pred_fallthru
      _
    // Predicated region
    $region34: #{a_call__.1} parent=1 // pred_check
      _
    $region35: #{a_call__.1} parent=1 // pred_check_branch
      %384 = sbr.rel (0) target = $region37
    $region36: #{a_call__.1} parent=1 // pred_region
      %s386 = ssub.s32 2048, 2048
      %387 = vsyncadd [#allocation5], %s386
      %s388 = sshll.u32 [#allocation9], 4
      %s389 = int_to_ptr.vmem [resolvable:$true] %s388
      %394 = dma.vmem_to_hbm [thread:$0]  %s389, 2048, %s3, [#allocation5], 128, 128, 8
    $region37: #{a_call__.1} parent=1 // pred_fallthru
      _
    // Predicated region
    $region38: #{a_call__.1} parent=1 // pred_check
      _
    $region39: #{a_call__.1} parent=1 // pred_check_branch
      %396 = sbr.rel (0) target = $region41
    $region40: #{a_call__.1} parent=1 // pred_region
      %397 = dma.done [#allocation5], 2048
    $region41: #{a_call__.1} parent=1 // pred_fallthru
      _
    %398 = vsyncpa [#allocation4], 1
    %399 = vsyncpa [#allocation7], 1
    %400 = vsyncpa [#allocation5], 1

</llo_original>
